<compile_context>
chip_gen: v5e
topology: v5e:2x2
jax: 0.10.0
libtpu: 0.0.40
codegen_flags: <defaults>
</compile_context>

<pallas_src>
import functools

import jax
import jax.numpy as jnp
import numpy as np
from jax.experimental import pallas as pl
from jax.experimental.pallas import tpu as pltpu


# ---------------------------------------------------------------------------
# helpers
# ---------------------------------------------------------------------------
def _round_up(x, m):
    return (x + m - 1) // m * m


def _pad_node_dim(n):
    """Padded size of the graph-node dimension (rows of X / rows+cols of Â)."""
    if n <= 128:
        return 128
    if n <= 512:
        return _round_up(n, 128)
    return _round_up(n, 512)          # lets tm=512 / tk up to 512 divide cleanly


def _pad_feat_dim(f):
    """Padded size of the (3*dim_E) feature dimension."""
    if f <= 128:
        return 128
    return _round_up(f, 256)          # 256-wide output tiles for the v6e/v7x MXU


# ---------------------------------------------------------------------------
# Pallas kernels: tiled matmul (bf16 MXU, f32 accumulation), optional bias.
# ---------------------------------------------------------------------------
def _mm_bias_acc_kernel(a_ref, b_ref, bias_ref, o_ref, acc_ref):
    k = pl.program_id(2)

    @pl.when(k == 0)
    def _():
        acc_ref[...] = jnp.zeros_like(acc_ref)

    acc_ref[...] += jnp.dot(
        a_ref[...].astype(jnp.bfloat16),
        b_ref[...].astype(jnp.bfloat16),
        preferred_element_type=jnp.float32,
    )

    @pl.when(k == pl.num_programs(2) - 1)
    def _():
        o_ref[...] = (acc_ref[...] + bias_ref[...]).astype(o_ref.dtype)


def _mm_acc_kernel(a_ref, b_ref, o_ref, acc_ref):
    k = pl.program_id(2)

    @pl.when(k == 0)
    def _():
        acc_ref[...] = jnp.zeros_like(acc_ref)

    acc_ref[...] += jnp.dot(
        a_ref[...].astype(jnp.bfloat16),
        b_ref[...].astype(jnp.bfloat16),
        preferred_element_type=jnp.float32,
    )

    @pl.when(k == pl.num_programs(2) - 1)
    def _():
        o_ref[...] = acc_ref[...].astype(o_ref.dtype)


def _mm_bias_single_kernel(a_ref, b_ref, bias_ref, o_ref):
    # Single K step: no accumulator scratch round-trip.
    o_ref[...] = (
        jnp.dot(
            a_ref[...].astype(jnp.bfloat16),
            b_ref[...].astype(jnp.bfloat16),
            preferred_element_type=jnp.float32,
        )
        + bias_ref[...]
    ).astype(o_ref.dtype)


def _mm_single_kernel(a_ref, b_ref, o_ref):
    o_ref[...] = jnp.dot(
        a_ref[...].astype(jnp.bfloat16),
        b_ref[...].astype(jnp.bfloat16),
        preferred_element_type=jnp.float32,
    ).astype(o_ref.dtype)


def _pick_tile(dim, candidates):
    for c in candidates:
        if dim % c == 0:
            return c
    return None


def matmul_bias(a, b, bias=None, *, out_dtype=jnp.float32):
    """out = a @ b (+ bias).  bf16 MXU compute, f32 accumulation.

    Operands are padded to tile boundaries ONLY if not already aligned, so
    pre-padded operands (Â, block-diag weights, resident activations) incur
    zero extra copies.  bias is (N,) / (1,N) / (1,Np) or None.
    """
    M, K = a.shape
    K2, N = b.shape
    assert K == K2, (a.shape, b.shape)

    # ---- tile selection (divisor search over large, VMEM-safe candidates) --
    Np = _round_up(N, 128)
    Kp = _round_up(K, 128)
    Mp = _round_up(M, 8)

    tn = _pick_tile(Np, (256, 128))
    tk = _pick_tile(Kp, (512, 256, 128))
    tm = _pick_tile(Mp, (512, 256))
    if tm is None:
        if Mp <= 512:
            tm = Mp                       # small M: single row-block
        else:
            tm = 256
            Mp = _round_up(Mp, tm)

    # ---- pad only when necessary (static shape check => no-op if aligned) --
    if (M, K) != (Mp, Kp):
        a = jnp.zeros((Mp, Kp), a.dtype).at[:M, :K].set(a)
    if (K, N) != (Kp, Np):
        b = jnp.zeros((Kp, Np), b.dtype).at[:K, :N].set(b)

    has_bias = bias is not None
    operands = [a, b]
    in_specs = [
        pl.BlockSpec((tm, tk), lambda i, j, k: (i, k)),
        pl.BlockSpec((tk, tn), lambda i, j, k: (k, j)),
    ]
    if has_bias:
        bias = bias.reshape(1, -1).astype(jnp.float32)
        if bias.shape[1] != Np:
            bias = jnp.zeros((1, Np), jnp.float32).at[:, : bias.shape[1]].set(bias)
        in_specs.append(pl.BlockSpec((1, tn), lambda i, j, k: (0, j)))
        operands.append(bias)

    nk = Kp // tk
    grid = (Mp // tm, Np // tn, nk)

    if nk == 1:
        kernel = _mm_bias_single_kernel if has_bias else _mm_single_kernel
        scratch = []
    else:
        kernel = _mm_bias_acc_kernel if has_bias else _mm_acc_kernel
        scratch = [pltpu.VMEM((tm, tn), jnp.float32)]

    out = pl.pallas_call(
        kernel,
        out_shape=jax.ShapeDtypeStruct((Mp, Np), out_dtype),
        grid_spec=pltpu.PrefetchScalarGridSpec(
            num_scalar_prefetch=0,
            grid=grid,
            in_specs=in_specs,
            out_specs=pl.BlockSpec((tm, tn), lambda i, j, k: (i, j)),
            scratch_shapes=scratch,
        ),
        compiler_params=pltpu.CompilerParams(
            dimension_semantics=("parallel", "parallel", "arbitrary"),
            vmem_limit_bytes=32 * 1024 * 1024,
        ),
    )(*operands)

    if (Mp, Np) != (M, N):
        out = out[:M, :N]
    return out


# ---------------------------------------------------------------------------
# MGCL forward (Pallas path): three modality graphs batched on feature axis.
# ---------------------------------------------------------------------------
def mgcl_forward_pallas(params, a_hat_pad, num_user, num_item):
    D = params["user_emb"].shape[1]
    n_nodes = num_user + num_item
    node_pad = a_hat_pad.shape[0]
    F = 3 * D
    feat_pad = _pad_feat_dim(F)

    # Modality projections (nn.Linear): one call each, bias fused in-kernel.
    v_emb = matmul_bias(params["v_feat"], params["image_trs_w"].T,
                        bias=params["image_trs_b"])
    t_emb = matmul_bias(params["t_feat"], params["text_trs_w"].T,
                        bias=params["text_trs_b"])

    # Layer-0 embeddings of the three graphs, concatenated on the feature axis
    # in padded layout [ id | visual | textual | 0-pad ].
    x = jnp.zeros((node_pad, feat_pad), jnp.float32)
    x = x.at[:num_user, 0 * D:1 * D].set(params["user_emb"])
    x = x.at[num_user:n_nodes, 0 * D:1 * D].set(params["item_emb"])
    x = x.at[:num_user, 1 * D:2 * D].set(params["user_emb_v"])
    x = x.at[num_user:n_nodes, 1 * D:2 * D].set(v_emb)
    x = x.at[:num_user, 2 * D:3 * D].set(params["user_emb_t"])
    x = x.at[num_user:n_nodes, 2 * D:3 * D].set(t_emb)

    # Pre-build per-layer padded block-diagonal weights (Wᵀ replicated 3x) and
    # tiled biases ONCE per layer, so  X @ blockdiag(Wᵀ,Wᵀ,Wᵀ)  applies the
    # shared GCNConv linear to all three modality graphs in one MXU pass.
    wbd_list, bias_list = [], []
    for w, b in zip(params["conv_w"], params["conv_b"]):
        wt = w.T.astype(jnp.bfloat16)
        wbd = jnp.zeros((feat_pad, feat_pad), jnp.bfloat16)
        for g in range(3):
            wbd = wbd.at[g * D:(g + 1) * D, g * D:(g + 1) * D].set(wt)
        bpad = jnp.zeros((1, feat_pad), jnp.float32).at[0, :F].set(jnp.tile(b, 3))
        wbd_list.append(wbd)
        bias_list.append(bpad)

    # GCN propagation ("add" aggregation + sym-norm + self-loops, dense Â):
    # Â streams through the MXU once per layer for all three graphs.
    acc = x
    for wbd, bpad in zip(wbd_list, bias_list):
        h = matmul_bias(x, wbd)                      # GCNConv internal Linear
        x = matmul_bias(a_hat_pad, h, bias=bpad)     # Â aggregation + conv bias
        acc = acc + x                                # running layer sum

    all_emb = acc * (1.0 / (len(wbd_list) + 1))      # == mean over stacked layers
    out = all_emb[:n_nodes, :F]
    e_g = out[:, 0 * D:1 * D]
    e_v = out[:, 1 * D:2 * D]
    e_t = out[:, 2 * D:3 * D]
    return (e_g[:num_user], e_g[num_user:],
            e_v[:num_user], e_v[num_user:],
            e_t[:num_user], e_t[num_user:])


# ---------------------------------------------------------------------------
# Pure-JAX f32 reference: the ORIGINAL (unbatched, stack+mean) formulation.
# ---------------------------------------------------------------------------
def mgcl_forward_reference(params, a_hat_f32, num_user):
    hp = jax.lax.Precision.HIGHEST

    def dense(x, w, b=None):
        out = jnp.dot(x, w.T, precision=hp)
        return out if b is None else out + b

    v_emb = dense(params["v_feat"], params["image_trs_w"], params["image_trs_b"])
    t_emb = dense(params["t_feat"], params["text_trs_w"], params["text_trs_b"])

    def propagate(x0):
        embs = [x0]
        x = x0
        for w, b in zip(params["conv_w"], params["conv_b"]):
            h = jnp.dot(x, w.T, precision=hp)
            x = jnp.dot(a_hat_f32, h, precision=hp) + b
            embs.append(x)
        e = jnp.mean(jnp.stack(embs, axis=1), axis=1)
        return e[:num_user], e[num_user:]

    u_g, i_g = propagate(jnp.concatenate([params["user_emb"], params["item_emb"]], 0))
    u_v, i_v = propagate(jnp.concatenate([params["user_emb_v"], v_emb], 0))
    u_t, i_t = propagate(jnp.concatenate([params["user_emb_t"], t_emb], 0))
    return u_g, i_g, u_v, i_v, u_t, i_t


# ---------------------------------------------------------------------------
# Parameter / graph construction (deterministic, in-script)
# ---------------------------------------------------------------------------
def xavier_uniform(key, shape):
    fan_in = shape[-1]
    fan_out = shape[-2] if len(shape) > 1 else shape[-1]
    a = float(np.sqrt(6.0 / (fan_in + fan_out)))
    return jax.random.uniform(key, shape, jnp.float32, -a, a)


def build_normalized_adj(edge_index_np, num_nodes):
    """Dense Â = D^{-1/2}(A+I)D^{-1/2} (PyG GCNConv sym-norm), returned both as
    a padded bf16 matrix (hoisted padding+cast, consumed by the kernel) and as
    the exact f32 matrix (for the reference)."""
    A = np.zeros((num_nodes, num_nodes), np.float32)
    src, dst = edge_index_np[:, 0], edge_index_np[:, 1]
    A[src, dst] = 1.0
    A[dst, src] = 1.0                      # edge_index is concatenated with its flip
    A += np.eye(num_nodes, dtype=np.float32)
    deg = A.sum(axis=1)
    d = 1.0 / np.sqrt(np.maximum(deg, 1e-12))
    a_hat = (d[:, None] * A) * d[None, :]

    node_pad = _pad_node_dim(num_nodes)
    a_pad = np.zeros((node_pad, node_pad), np.float32)
    a_pad[:num_nodes, :num_nodes] = a_hat
    return jnp.asarray(a_pad, jnp.bfloat16), jnp.asarray(a_hat, jnp.float32)


def make_params(key, num_user, num_item, dim_E, v_dim, t_dim, n_layers):
    keys = jax.random.split(key, 12 + 2 * n_layers)
    params = {
        "user_emb":   xavier_uniform(keys[0], (num_user, dim_E)),
        "item_emb":   xavier_uniform(keys[1], (num_item, dim_E)),
        "user_emb_v": xavier_uniform(keys[2], (num_user, dim_E)),
        "user_emb_t": xavier_uniform(keys[3], (num_user, dim_E)),
        "image_trs_w": xavier_uniform(keys[4], (dim_E, v_dim)),   # (out, in) as nn.Linear
        "image_trs_b": jax.random.uniform(keys[5], (dim_E,), jnp.float32, -0.1, 0.1),
        "text_trs_w":  xavier_uniform(keys[6], (dim_E, t_dim)),
        "text_trs_b":  jax.random.uniform(keys[7], (dim_E,), jnp.float32, -0.1, 0.1),
        "v_feat": 0.1 * jax.random.normal(keys[8], (num_item, v_dim), jnp.float32),
        "t_feat": 0.1 * jax.random.normal(keys[9], (num_item, t_dim), jnp.float32),
    }
    conv_w, conv_b = [], []
    for l in range(n_layers):
        conv_w.append(xavier_uniform(keys[10 + 2 * l], (dim_E, dim_E)))
        conv_b.append(jnp.zeros((dim_E,), jnp.float32))   # PyG GCNConv bias init = zeros
    params["conv_w"] = conv_w
    params["conv_b"] = conv_b
    return params


if __name__ == "__main__":
    num_user, num_item = 8, 8
    dim_E, v_dim, t_dim = 32, 300, 200   # v_dim exercises the multi-K-step kernel path
    n_layers = 2
    num_nodes = num_user + num_item

    # Deterministic small bipartite interaction graph (user u -> item offsets).
    edges = []
    for u in range(num_user):
        for off in (0, 1, 3):
            edges.append((u, num_user + (u + off) % num_item))
    edge_index_np = np.asarray(edges, np.int64)

    a_hat_pad, a_hat_f32 = build_normalized_adj(edge_index_np, num_nodes)
    params = make_params(jax.random.PRNGKey(0), num_user, num_item,
                         dim_E, v_dim, t_dim, n_layers)

    fwd = jax.jit(functools.partial(
        mgcl_forward_pallas, num_user=num_user, num_item=num_item))
    outs = jax.block_until_ready(fwd(params, a_hat_pad))

    # Compare against pure-f32 reference (kernel runs bf16 MXU -> relaxed tol).
    refs = mgcl_forward_reference(params, a_hat_f32, num_user)
    names = ["u_g", "i_g", "u_v", "i_v", "u_t", "i_t"]
    for name, o, r in zip(names, outs, refs):
        np.testing.assert_allclose(np.asarray(o), np.asarray(r),
                                   rtol=5e-2, atol=5e-2, err_msg=name)

    print("KERNEL_OK")
</pallas_src>

<mosaic_0001>
module attributes {stable_mosaic.version = 11 : i64} {
  func.func @_mm_bias_acc_kernel(%arg0: i32, %arg1: i32, %arg2: i32, %arg3: memref<8x128xf32, #tpu.memory_space<vmem>>, %arg4: memref<128x128xf32, #tpu.memory_space<vmem>>, %arg5: memref<1x128xf32, #tpu.memory_space<vmem>>, %arg6: memref<8x128xf32, #tpu.memory_space<vmem>>, %arg7: memref<8x128xf32, #tpu.memory_space<vmem>>) attributes {dimension_semantics = [#tpu.dimension_semantics<parallel>, #tpu.dimension_semantics<parallel>, #tpu.dimension_semantics<arbitrary>], iteration_bounds = array<i64: 1, 1, 3>, scalar_prefetch = 0 : i64, scratch_operands = 1 : i64, tpu.core_type = #tpu.core_type<tc>, window_params = [{transform_indices = @transform_0, window_bounds = array<i64: 8, 128>}, {transform_indices = @transform_1, window_bounds = array<i64: 128, 128>}, {transform_indices = @transform_2, window_bounds = array<i64: 1, 128>}, {transform_indices = @transform_3, window_bounds = array<i64: 8, 128>}]} {
    %c0_i32 = arith.constant 0 : i32
    %0 = arith.cmpi eq, %arg2, %c0_i32 : i32
    %1 = arith.extui %0 : i1 to i32
    %c0_i32_0 = arith.constant 0 : i32
    %2 = arith.cmpi ne, %1, %c0_i32_0 : i32
    scf.if %2 {
      %cst_9 = arith.constant 0.000000e+00 : f32
      %14 = vector.broadcast %cst_9 : f32 to vector<8x128xf32>
      %c0_10 = arith.constant 0 : index
      %c0_11 = arith.constant 0 : index
      %15 = vector.load %arg7[%c0_10, %c0_11] : memref<8x128xf32, #tpu.memory_space<vmem>>, vector<8x128xf32>
      tpu.vector_store %arg7[%c0_10, %c0_11], %14 {strides = array<i32>} : memref<8x128xf32, #tpu.memory_space<vmem>>, vector<8x128xf32>,
    } else {
    }
    %c0 = arith.constant 0 : index
    %c0_1 = arith.constant 0 : index
    %3 = vector.load %arg7[%c0, %c0_1] : memref<8x128xf32, #tpu.memory_space<vmem>>, vector<8x128xf32>
    %c0_2 = arith.constant 0 : index
    %c0_3 = arith.constant 0 : index
    %4 = vector.load %arg3[%c0_2, %c0_3] : memref<8x128xf32, #tpu.memory_space<vmem>>, vector<8x128xf32>
    %5 = arith.truncf %4 : vector<8x128xf32> to vector<8x128xbf16>
    %c0_4 = arith.constant 0 : index
    %c0_5 = arith.constant 0 : index
    %6 = vector.load %arg4[%c0_4, %c0_5] : memref<128x128xf32, #tpu.memory_space<vmem>>, vector<128x128xf32>
    %7 = arith.truncf %6 : vector<128x128xf32> to vector<128x128xbf16>
    %cst = arith.constant dense<0.000000e+00> : vector<8x128xf32>
    %8 = tpu.matmul %5, %7, %cst {dimension_numbers = #tpu.dot_dimension_numbers<[1], [0], [0], [1], [0, 0, 1, 1], [], []>} : vector<8x128xbf16>, vector<128x128xbf16>, vector<8x128xf32> -> vector<8x128xf32>
    %9 = arith.addf %3, %8 : vector<8x128xf32>
    %c0_6 = arith.constant 0 : index
    %c0_7 = arith.constant 0 : index
    %10 = vector.load %arg7[%c0_6, %c0_7] : memref<8x128xf32, #tpu.memory_space<vmem>>, vector<8x128xf32>
    tpu.vector_store %arg7[%c0_6, %c0_7], %9 {strides = array<i32>} : memref<8x128xf32, #tpu.memory_space<vmem>>, vector<8x128xf32>,
    %c2_i32 = arith.constant 2 : i32
    %11 = arith.cmpi eq, %arg2, %c2_i32 : i32
    %12 = arith.extui %11 : i1 to i32
    %c0_i32_8 = arith.constant 0 : i32
    %13 = arith.cmpi ne, %12, %c0_i32_8 : i32
    scf.if %13 {
      %c0_9 = arith.constant 0 : index
      %c0_10 = arith.constant 0 : index
      %14 = vector.load %arg7[%c0_9, %c0_10] : memref<8x128xf32, #tpu.memory_space<vmem>>, vector<8x128xf32>
      %c0_11 = arith.constant 0 : index
      %c0_12 = arith.constant 0 : index
      %15 = vector.load %arg5[%c0_11, %c0_12] : memref<1x128xf32, #tpu.memory_space<vmem>>, vector<1x128xf32>
      %16 = vector.broadcast %15 : vector<1x128xf32> to vector<8x128xf32>
      %17 = arith.addf %14, %16 : vector<8x128xf32>
      %c0_13 = arith.constant 0 : index
      %c0_14 = arith.constant 0 : index
      %18 = vector.load %arg6[%c0_13, %c0_14] : memref<8x128xf32, #tpu.memory_space<vmem>>, vector<8x128xf32>
      tpu.vector_store %arg6[%c0_13, %c0_14], %17 {strides = array<i32>} : memref<8x128xf32, #tpu.memory_space<vmem>>, vector<8x128xf32>,
    } else {
    }
    return
  }
  func.func @transform_0(%arg0: i32, %arg1: i32, %arg2: i32) -> (i32, i32) {
    %c0_i32 = arith.constant 0 : i32
    return %arg0, %arg2 : i32, i32
  }
  func.func @transform_1(%arg0: i32, %arg1: i32, %arg2: i32) -> (i32, i32) {
    %c0_i32 = arith.constant 0 : i32
    return %arg2, %arg1 : i32, i32
  }
  func.func @transform_2(%arg0: i32, %arg1: i32, %arg2: i32) -> (i32, i32) {
    %c0_i32 = arith.constant 0 : i32
    %c0_i32_0 = arith.constant 0 : i32
    return %c0_i32, %arg1 : i32, i32
  }
  func.func @transform_3(%arg0: i32, %arg1: i32, %arg2: i32) -> (i32, i32) {
    %c0_i32 = arith.constant 0 : i32
    return %arg0, %arg1 : i32, i32
  }
}

module attributes {stable_mosaic.version = 11 : i64} {
  func.func @_mm_bias_single_kernel(%arg0: i32, %arg1: i32, %arg2: i32, %arg3: memref<8x256xf32, #tpu.memory_space<vmem>>, %arg4: memref<256x128xf32, #tpu.memory_space<vmem>>, %arg5: memref<1x128xf32, #tpu.memory_space<vmem>>, %arg6: memref<8x128xf32, #tpu.memory_space<vmem>>) attributes {dimension_semantics = [#tpu.dimension_semantics<parallel>, #tpu.dimension_semantics<parallel>, #tpu.dimension_semantics<arbitrary>], iteration_bounds = array<i64: 1, 1, 1>, scalar_prefetch = 0 : i64, scratch_operands = 0 : i64, tpu.core_type = #tpu.core_type<tc>, window_params = [{transform_indices = @transform_0, window_bounds = array<i64: 8, 256>}, {transform_indices = @transform_1, window_bounds = array<i64: 256, 128>}, {transform_indices = @transform_2, window_bounds = array<i64: 1, 128>}, {transform_indices = @transform_3, window_bounds = array<i64: 8, 128>}]} {
    %c0 = arith.constant 0 : index
    %c0_0 = arith.constant 0 : index
    %0 = vector.load %arg3[%c0, %c0_0] : memref<8x256xf32, #tpu.memory_space<vmem>>, vector<8x256xf32>
    %1 = arith.truncf %0 : vector<8x256xf32> to vector<8x256xbf16>
    %c0_1 = arith.constant 0 : index
    %c0_2 = arith.constant 0 : index
    %2 = vector.load %arg4[%c0_1, %c0_2] : memref<256x128xf32, #tpu.memory_space<vmem>>, vector<256x128xf32>
    %3 = arith.truncf %2 : vector<256x128xf32> to vector<256x128xbf16>
    %cst = arith.constant dense<0.000000e+00> : vector<8x128xf32>
    %4 = tpu.matmul %1, %3, %cst {dimension_numbers = #tpu.dot_dimension_numbers<[1], [0], [0], [1], [0, 0, 1, 1], [], []>} : vector<8x256xbf16>, vector<256x128xbf16>, vector<8x128xf32> -> vector<8x128xf32>
    %c0_3 = arith.constant 0 : index
    %c0_4 = arith.constant 0 : index
    %5 = vector.load %arg5[%c0_3, %c0_4] : memref<1x128xf32, #tpu.memory_space<vmem>>, vector<1x128xf32>
    %6 = vector.broadcast %5 : vector<1x128xf32> to vector<8x128xf32>
    %7 = arith.addf %4, %6 : vector<8x128xf32>
    %c0_5 = arith.constant 0 : index
    %c0_6 = arith.constant 0 : index
    %8 = vector.load %arg6[%c0_5, %c0_6] : memref<8x128xf32, #tpu.memory_space<vmem>>, vector<8x128xf32>
    tpu.vector_store %arg6[%c0_5, %c0_6], %7 {strides = array<i32>} : memref<8x128xf32, #tpu.memory_space<vmem>>, vector<8x128xf32>,
    return
  }
  func.func @transform_0(%arg0: i32, %arg1: i32, %arg2: i32) -> (i32, i32) {
    %c0_i32 = arith.constant 0 : i32
    return %arg0, %arg2 : i32, i32
  }
  func.func @transform_1(%arg0: i32, %arg1: i32, %arg2: i32) -> (i32, i32) {
    %c0_i32 = arith.constant 0 : i32
    return %arg2, %arg1 : i32, i32
  }
  func.func @transform_2(%arg0: i32, %arg1: i32, %arg2: i32) -> (i32, i32) {
    %c0_i32 = arith.constant 0 : i32
    %c0_i32_0 = arith.constant 0 : i32
    return %c0_i32, %arg1 : i32, i32
  }
  func.func @transform_3(%arg0: i32, %arg1: i32, %arg2: i32) -> (i32, i32) {
    %c0_i32 = arith.constant 0 : i32
    return %arg0, %arg1 : i32, i32
  }
}

module attributes {stable_mosaic.version = 11 : i64} {
  func.func @_mm_single_kernel(%arg0: i32, %arg1: i32, %arg2: i32, %arg3: memref<128x128xf32, #tpu.memory_space<vmem>>, %arg4: memref<128x128xbf16, #tpu.memory_space<vmem>>, %arg5: memref<128x128xf32, #tpu.memory_space<vmem>>) attributes {dimension_semantics = [#tpu.dimension_semantics<parallel>, #tpu.dimension_semantics<parallel>, #tpu.dimension_semantics<arbitrary>], iteration_bounds = array<i64: 1, 1, 1>, scalar_prefetch = 0 : i64, scratch_operands = 0 : i64, tpu.core_type = #tpu.core_type<tc>, window_params = [{transform_indices = @transform_0, window_bounds = array<i64: 128, 128>}, {transform_indices = @transform_1, window_bounds = array<i64: 128, 128>}, {transform_indices = @transform_2, window_bounds = array<i64: 128, 128>}]} {
    %c0 = arith.constant 0 : index
    %c0_0 = arith.constant 0 : index
    %0 = vector.load %arg3[%c0, %c0_0] : memref<128x128xf32, #tpu.memory_space<vmem>>, vector<128x128xf32>
    %1 = arith.truncf %0 : vector<128x128xf32> to vector<128x128xbf16>
    %c0_1 = arith.constant 0 : index
    %c0_2 = arith.constant 0 : index
    %2 = vector.load %arg4[%c0_1, %c0_2] : memref<128x128xbf16, #tpu.memory_space<vmem>>, vector<128x128xbf16>
    %cst = arith.constant dense<0.000000e+00> : vector<128x128xf32>
    %3 = tpu.matmul %1, %2, %cst {dimension_numbers = #tpu.dot_dimension_numbers<[1], [0], [0], [1], [0, 0, 1, 1], [], []>} : vector<128x128xbf16>, vector<128x128xbf16>, vector<128x128xf32> -> vector<128x128xf32>
    %c0_3 = arith.constant 0 : index
    %c0_4 = arith.constant 0 : index
    %4 = vector.load %arg5[%c0_3, %c0_4] : memref<128x128xf32, #tpu.memory_space<vmem>>, vector<128x128xf32>
    tpu.vector_store %arg5[%c0_3, %c0_4], %3 {strides = array<i32>} : memref<128x128xf32, #tpu.memory_space<vmem>>, vector<128x128xf32>,
    return
  }
  func.func @transform_0(%arg0: i32, %arg1: i32, %arg2: i32) -> (i32, i32) {
    %c0_i32 = arith.constant 0 : i32
    return %arg0, %arg2 : i32, i32
  }
  func.func @transform_1(%arg0: i32, %arg1: i32, %arg2: i32) -> (i32, i32) {
    %c0_i32 = arith.constant 0 : i32
    return %arg2, %arg1 : i32, i32
  }
  func.func @transform_2(%arg0: i32, %arg1: i32, %arg2: i32) -> (i32, i32) {
    %c0_i32 = arith.constant 0 : i32
    return %arg0, %arg1 : i32, i32
  }
}

module attributes {stable_mosaic.version = 11 : i64} {
  func.func @_mm_bias_single_kernel(%arg0: i32, %arg1: i32, %arg2: i32, %arg3: memref<128x128xbf16, #tpu.memory_space<vmem>>, %arg4: memref<128x128xf32, #tpu.memory_space<vmem>>, %arg5: memref<1x128xf32, #tpu.memory_space<vmem>>, %arg6: memref<128x128xf32, #tpu.memory_space<vmem>>) attributes {dimension_semantics = [#tpu.dimension_semantics<parallel>, #tpu.dimension_semantics<parallel>, #tpu.dimension_semantics<arbitrary>], iteration_bounds = array<i64: 1, 1, 1>, scalar_prefetch = 0 : i64, scratch_operands = 0 : i64, tpu.core_type = #tpu.core_type<tc>, window_params = [{transform_indices = @transform_0, window_bounds = array<i64: 128, 128>}, {transform_indices = @transform_1, window_bounds = array<i64: 128, 128>}, {transform_indices = @transform_2, window_bounds = array<i64: 1, 128>}, {transform_indices = @transform_3, window_bounds = array<i64: 128, 128>}]} {
    %c0 = arith.constant 0 : index
    %c0_0 = arith.constant 0 : index
    %0 = vector.load %arg3[%c0, %c0_0] : memref<128x128xbf16, #tpu.memory_space<vmem>>, vector<128x128xbf16>
    %c0_1 = arith.constant 0 : index
    %c0_2 = arith.constant 0 : index
    %1 = vector.load %arg4[%c0_1, %c0_2] : memref<128x128xf32, #tpu.memory_space<vmem>>, vector<128x128xf32>
    %2 = arith.truncf %1 : vector<128x128xf32> to vector<128x128xbf16>
    %cst = arith.constant dense<0.000000e+00> : vector<128x128xf32>
    %3 = tpu.matmul %0, %2, %cst {dimension_numbers = #tpu.dot_dimension_numbers<[1], [0], [0], [1], [0, 0, 1, 1], [], []>} : vector<128x128xbf16>, vector<128x128xbf16>, vector<128x128xf32> -> vector<128x128xf32>
    %c0_3 = arith.constant 0 : index
    %c0_4 = arith.constant 0 : index
    %4 = vector.load %arg5[%c0_3, %c0_4] : memref<1x128xf32, #tpu.memory_space<vmem>>, vector<1x128xf32>
    %5 = vector.broadcast %4 : vector<1x128xf32> to vector<128x128xf32>
    %6 = arith.addf %3, %5 : vector<128x128xf32>
    %c0_5 = arith.constant 0 : index
    %c0_6 = arith.constant 0 : index
    %7 = vector.load %arg6[%c0_5, %c0_6] : memref<128x128xf32, #tpu.memory_space<vmem>>, vector<128x128xf32>
    tpu.vector_store %arg6[%c0_5, %c0_6], %6 {strides = array<i32>} : memref<128x128xf32, #tpu.memory_space<vmem>>, vector<128x128xf32>,
    return
  }
  func.func @transform_0(%arg0: i32, %arg1: i32, %arg2: i32) -> (i32, i32) {
    %c0_i32 = arith.constant 0 : i32
    return %arg0, %arg2 : i32, i32
  }
  func.func @transform_1(%arg0: i32, %arg1: i32, %arg2: i32) -> (i32, i32) {
    %c0_i32 = arith.constant 0 : i32
    return %arg2, %arg1 : i32, i32
  }
  func.func @transform_2(%arg0: i32, %arg1: i32, %arg2: i32) -> (i32, i32) {
    %c0_i32 = arith.constant 0 : i32
    %c0_i32_0 = arith.constant 0 : i32
    return %c0_i32, %arg1 : i32, i32
  }
  func.func @transform_3(%arg0: i32, %arg1: i32, %arg2: i32) -> (i32, i32) {
    %c0_i32 = arith.constant 0 : i32
    return %arg0, %arg1 : i32, i32
  }
}

</mosaic_0001>

<llo_original>
// kernel: mgcl_forward_pallas.7
$region0: #{mgcl_forward_pallas.7}
  #allocation0 [shape = 'u32[]', space=smem, size = 0x4, offset = 0x4, fixed_abs, tag = 'smem constant byte address 0x4 - core index']
  #allocation1 [shape = 'u32[72,128]{1,0:T(1,128)}', space=vmem, size = 0x9000, scoped, tag = 'internal scratch']
  %s0 = inlined_call_operand.vmem [shape: f32[8,256], index: 0, kind: input, shape index: {}]
  %s1 = inlined_call_operand.vmem [shape: f32[256,128], index: 1, kind: input, shape index: {}]
  %s2 = inlined_call_operand.vmem [shape: f32[1,128], index: 2, kind: input, shape index: {}]
  %s3 = inlined_call_operand.vmem [shape: f32[8,128], index: 3, kind: output, shape index: {}]
  %s4 = sld [smem:[#allocation0]]
  $region22: #{mgcl_forward_pallas.7} parent=0
    _
  %s6 = ssub.s32 1, %s4
  %s7 = scalar_select 0, %s6, %s4
  // Predicated region
  $region2: #{mgcl_forward_pallas.7} parent=0 // pred_check
    _
  $region3: #{mgcl_forward_pallas.7} parent=0 // pred_check_branch
    %9 = sbr.rel (0) target = $region5
  $region4: #{mgcl_forward_pallas.7} parent=0 // pred_region
    _
  $region5: #{mgcl_forward_pallas.7} parent=0 // pred_fallthru
    _
  // Predicated region
  $region6: #{mgcl_forward_pallas.7} parent=0 // pred_check
    _
  $region7: #{mgcl_forward_pallas.7} parent=0 // pred_check_branch
    %11 = sbr.rel (0) target = $region9
  $region8: #{mgcl_forward_pallas.7} parent=0 // pred_region
    _
  $region9: #{mgcl_forward_pallas.7} parent=0 // pred_fallthru
    _
  // Predicated region
  $region10: #{mgcl_forward_pallas.7} parent=0 // pred_check
    _
  $region11: #{mgcl_forward_pallas.7} parent=0 // pred_check_branch
    %13 = sbr.rel (0) target = $region13
  $region12: #{mgcl_forward_pallas.7} parent=0 // pred_region
    _
  $region13: #{mgcl_forward_pallas.7} parent=0 // pred_fallthru
    _
  %v14 = vld [vmem:[%s0] sm:$0xff]
  %v15 = vld [vmem:[%s0 + $0x8] sm:$0xff]
  %v16 = vpack.c.bf16 %v14, %v14
  %v17 = vpack.c.bf16 %v15, %v15
  %v18 = vld [vmem:[%s1] sm:$0xff]
  %v19 = vld [vmem:[%s1 + $0x8] sm:$0xff]
  %v20 = vld [vmem:[%s1 + $0x10] sm:$0xff]
  %v21 = vld [vmem:[%s1 + $0x18] sm:$0xff]
  %v22 = vld [vmem:[%s1 + $0x20] sm:$0xff]
  %v23 = vld [vmem:[%s1 + $0x28] sm:$0xff]
  %v24 = vld [vmem:[%s1 + $0x30] sm:$0xff]
  %v25 = vld [vmem:[%s1 + $0x38] sm:$0xff]
  %v26 = vld [vmem:[%s1 + $0x40] sm:$0xff]
  %v27 = vld [vmem:[%s1 + $0x48] sm:$0xff]
  %v28 = vld [vmem:[%s1 + $0x50] sm:$0xff]
  %v29 = vld [vmem:[%s1 + $0x58] sm:$0xff]
  %v30 = vld [vmem:[%s1 + $0x60] sm:$0xff]
  %v31 = vld [vmem:[%s1 + $0x68] sm:$0xff]
  %v32 = vld [vmem:[%s1 + $0x70] sm:$0xff]
  %v33 = vld [vmem:[%s1 + $0x78] sm:$0xff]
  %v34 = vld [vmem:[%s1 + $0x80] sm:$0xff]
  %v35 = vld [vmem:[%s1 + $0x88] sm:$0xff]
  %v36 = vld [vmem:[%s1 + $0x90] sm:$0xff]
  %v37 = vld [vmem:[%s1 + $0x98] sm:$0xff]
  %v38 = vld [vmem:[%s1 + $0xa0] sm:$0xff]
  %v39 = vld [vmem:[%s1 + $0xa8] sm:$0xff]
  %v40 = vld [vmem:[%s1 + $0xb0] sm:$0xff]
  %v41 = vld [vmem:[%s1 + $0xb8] sm:$0xff]
  %v42 = vld [vmem:[%s1 + $0xc0] sm:$0xff]
  %v43 = vld [vmem:[%s1 + $0xc8] sm:$0xff]
  %v44 = vld [vmem:[%s1 + $0xd0] sm:$0xff]
  %v45 = vld [vmem:[%s1 + $0xd8] sm:$0xff]
  %v46 = vld [vmem:[%s1 + $0xe0] sm:$0xff]
  %v47 = vld [vmem:[%s1 + $0xe8] sm:$0xff]
  %v48 = vld [vmem:[%s1 + $0xf0] sm:$0xff]
  %v49 = vld [vmem:[%s1 + $0xf8] sm:$0xff]
  %v50 = vpack.c.bf16 %v19, %v18
  %v51 = vpack.c.bf16 %v21, %v20
  %v52 = vpack.c.bf16 %v23, %v22
  %v53 = vpack.c.bf16 %v25, %v24
  %v54 = vpack.c.bf16 %v27, %v26
  %v55 = vpack.c.bf16 %v29, %v28
  %v56 = vpack.c.bf16 %v31, %v30
  %v57 = vpack.c.bf16 %v33, %v32
  %v58 = vpack.c.bf16 %v35, %v34
  %v59 = vpack.c.bf16 %v37, %v36
  %v60 = vpack.c.bf16 %v39, %v38
  %v61 = vpack.c.bf16 %v41, %v40
  %v62 = vpack.c.bf16 %v43, %v42
  %v63 = vpack.c.bf16 %v45, %v44
  %v64 = vpack.c.bf16 %v47, %v46
  %v65 = vpack.c.bf16 %v49, %v48
  %v66 = vld [vmem:[%s2] sm:$0x1]
  %v68 = vperm.slane %v66, 0
  %70 = vmatpush.bf16.msra.mxu0 %v57
  %71 = vmatpush.bf16.msra.mxu0 %v56
  %72 = vmatpush.bf16.msra.mxu0 %v55
  %73 = vmatpush.bf16.msra.mxu0 %v54
  %74 = vmatpush.bf16.msra.mxu0 %v53
  %75 = vmatpush.bf16.msra.mxu0 %v52
  %76 = vmatpush.bf16.msra.mxu0 %v51
  %77 = vmatpush.bf16.msra.mxu0 %v50
  %78 = vmatmul.bf16.gmra.mxu0 %v16
  %v79 = vpop.f32.mrf.mxu0
  %v80 = vadd.f32 %v68, %v79
  %v81 = vpop.f32.mrf.mxu0
  %82 = vdwg.mxu0
  %83 = vmatpush.bf16.msra.mxu0 %v65
  %84 = vmatpush.bf16.msra.mxu0 %v64
  %85 = vmatpush.bf16.msra.mxu0 %v63
  %86 = vmatpush.bf16.msra.mxu0 %v62
  %87 = vmatpush.bf16.msra.mxu0 %v61
  %88 = vmatpush.bf16.msra.mxu0 %v60
  %89 = vmatpush.bf16.msra.mxu0 %v59
  %90 = vmatpush.bf16.msra.mxu0 %v58
  %91 = vmatmul.bf16.gmra.mxu0 %v17
  %v92 = vpop.f32.mrf.mxu0
  %v93 = vadd.f32 %v80, %v92
  %v94 = vpop.f32.mrf.mxu0
  %95 = vdwg.mxu0
  %96 = vst [vmem:[%s3] sm:$0xff] %v93
  // Predicated region
  $region14: #{mgcl_forward_pallas.7} parent=0 // pred_check
    _
  $region15: #{mgcl_forward_pallas.7} parent=0 // pred_check_branch
    %98 = sbr.rel (0) target = $region17
  $region16: #{mgcl_forward_pallas.7} parent=0 // pred_region
    _
  $region17: #{mgcl_forward_pallas.7} parent=0 // pred_fallthru
    _
  // Predicated region
  $region18: #{mgcl_forward_pallas.7} parent=0 // pred_check
    _
  $region19: #{mgcl_forward_pallas.7} parent=0 // pred_check_branch
    %100 = sbr.rel (0) target = $region21
  $region20: #{mgcl_forward_pallas.7} parent=0 // pred_region
    _
  $region21: #{mgcl_forward_pallas.7} parent=0 // pred_fallthru
    _

// kernel: mgcl_forward_pallas.6
$region0: #{mgcl_forward_pallas.6}
  #allocation0 [shape = 'u32[]', space=smem, size = 0x4, offset = 0x4, fixed_abs, tag = 'smem constant byte address 0x4 - core index']
  #allocation1 [shape = 'u32[72,128]{1,0:T(1,128)}', space=vmem, size = 0x9000, scoped, tag = 'internal scratch']
  #allocation2 [shape = 'f32[8,128]{1,0:T(8,128)}', space=vmem, size = 0x1000, scoped, tag = 'scratch operand']
  %s0 = inlined_call_operand.vmem [shape: f32[8,384], index: 0, kind: input, shape index: {}]
  %s1 = inlined_call_operand.vmem [shape: f32[384,128], index: 1, kind: input, shape index: {}]
  %s2 = inlined_call_operand.vmem [shape: f32[1,128], index: 2, kind: input, shape index: {}]
  %s3 = inlined_call_operand.vmem [shape: f32[8,128], index: 3, kind: output, shape index: {}]
  %s4 = sld [smem:[#allocation0]]
  $region53: #{mgcl_forward_pallas.6} parent=0
    _
  %s6 = ssub.s32 1, %s4
  %s7 = scalar_select 0, %s6, %s4
  loop: start=0, step=1, limit=5
  $region2: #{mgcl_forward_pallas.6} parent=0 // loop_pre_header
    _
  $region3: #{mgcl_forward_pallas.6} parent=0 // loop_header
    %s9 = sphi 0, %s13
    %p10 = scmp.ge.s32.totalorder %s9, 5
    %s16 = sphi 0, %s35
    %s17 = sphi 0, %s31
    %s18 = sphi 0, %s27
    %s19 = sphi 0, %s16
    %s20 = sphi 0, %s17
    %s21 = sphi 0, %s18
    %s22 = sphi 0, %s19
    %s23 = sphi 0, %s20
    %s24 = sphi 0, %s21
    %s40 = sphi 0, %s42
    %s43 = sphi 0, %s40
    %s44 = sphi 0, %s43
    %s60 = sphi 0, %s44
    %s68 = sphi 0, %s70
    %s71 = sphi 0, %s68
    %s72 = sphi 0, %s71
    %s88 = sphi 0, %s72
    %s94 = sphi 0, %s96
    %s97 = sphi 0, %s94
    %s98 = sphi 0, %s97
    %s114 = sphi 0, %s98
    %s122 = sphi 0, %s124
    %s125 = sphi 0, %s122
    %s126 = sphi 0, %s125
    %s142 = sphi 0, %s126
  $region4: #{mgcl_forward_pallas.6} parent=0 // loop_header_branch
    %12 = sbr.rel (%p10) target = $region8
  $region5: #{mgcl_forward_pallas.6} parent=0 // loop_body
    %s14 = ssub.s32 %s9, 1
    %s15 = ssub.s32 %s9, 2
    %s25 = sadd.s32 1, %s18
    %p26 = scmp.ge.s32.totalorder %s25, 3
    %s27 = scalar_select %p26, 0, %s25
    %s28 = sadd.s32 1, %s17
    %s29 = scalar_select %p26, %s28, %s17
    %p30 = scmp.ge.s32.totalorder %s29, 1
    %s31 = scalar_select %p30, 0, %s29
    %s32 = sadd.s32 1, %s16
    %s33 = scalar_select %p30, %s32, %s16
    %p34 = scmp.ge.s32.totalorder %s33, 1
    %s35 = scalar_select %p34, 0, %s33
    %s36 = ssub.s32 %s16, %s35
    %s37 = ssub.s32 %s18, %s27
    %s38 = sor.u32 %s36, %s37
    %p39 = scmp.eq.s32.totalorder %s38, 0
    %s41 = sadd.s32 %s40, 1
    %s42 = scalar_select %p39, %s40, %s41
    %p45 = pneg %p39
    %p46 = scmp.eq.s32.totalorder %s9, 2
    %p47 = por %p45, %p46
    %p48 = scmp.ne.s32.totalorder %s40, %s43
    %p49 = scmp.eq.s32.totalorder %s9, 0
    %p50 = por %p48, %p49
    %p51 = scmp.ne.s32.totalorder %s40, %s43
    %p52 = scmp.eq.s32.totalorder %s14, 2
    %p53 = por %p51, %p52
    %p54 = scmp.ne.s32.totalorder %s43, %s44
    %p55 = scmp.eq.s32.totalorder %s14, 0
    %p56 = por %p54, %p55
    %p57 = scmp.ne.s32.totalorder %s43, %s44
    %p58 = scmp.eq.s32.totalorder %s15, 2
    %p59 = por %p57, %p58
    %p61 = scmp.ne.s32.totalorder %s44, %s60
    %p62 = scmp.eq.s32.totalorder %s15, 0
    %p63 = por %p61, %p62
    %s64 = ssub.s32 %s18, %s27
    %s65 = ssub.s32 %s17, %s31
    %s66 = sor.u32 %s64, %s65
    %p67 = scmp.eq.s32.totalorder %s66, 0
    %s69 = sadd.s32 %s68, 1
    %s70 = scalar_select %p67, %s68, %s69
    %p73 = pneg %p67
    %p74 = scmp.eq.s32.totalorder %s9, 2
    %p75 = por %p73, %p74
    %p76 = scmp.ne.s32.totalorder %s68, %s71
    %p77 = scmp.eq.s32.totalorder %s9, 0
    %p78 = por %p76, %p77
    %p79 = scmp.ne.s32.totalorder %s68, %s71
    %p80 = scmp.eq.s32.totalorder %s14, 2
    %p81 = por %p79, %p80
    %p82 = scmp.ne.s32.totalorder %s71, %s72
    %p83 = scmp.eq.s32.totalorder %s14, 0
    %p84 = por %p82, %p83
    %p85 = scmp.ne.s32.totalorder %s71, %s72
    %p86 = scmp.eq.s32.totalorder %s15, 2
    %p87 = por %p85, %p86
    %p89 = scmp.ne.s32.totalorder %s72, %s88
    %p90 = scmp.eq.s32.totalorder %s15, 0
    %p91 = por %p89, %p90
    %s92 = ssub.s32 %s17, %s31
    %p93 = scmp.eq.s32.totalorder %s92, 0
    %s95 = sadd.s32 %s94, 1
    %s96 = scalar_select %p93, %s94, %s95
    %p99 = pneg %p93
    %p100 = scmp.eq.s32.totalorder %s9, 2
    %p101 = por %p99, %p100
    %p102 = scmp.ne.s32.totalorder %s94, %s97
    %p103 = scmp.eq.s32.totalorder %s9, 0
    %p104 = por %p102, %p103
    %p105 = scmp.ne.s32.totalorder %s94, %s97
    %p106 = scmp.eq.s32.totalorder %s14, 2
    %p107 = por %p105, %p106
    %p108 = scmp.ne.s32.totalorder %s97, %s98
    %p109 = scmp.eq.s32.totalorder %s14, 0
    %p110 = por %p108, %p109
    %p111 = scmp.ne.s32.totalorder %s97, %s98
    %p112 = scmp.eq.s32.totalorder %s15, 2
    %p113 = por %p111, %p112
    %p115 = scmp.ne.s32.totalorder %s98, %s114
    %p116 = scmp.eq.s32.totalorder %s15, 0
    %p117 = por %p115, %p116
    %s118 = ssub.s32 %s16, %s35
    %s119 = ssub.s32 %s17, %s31
    %s120 = sor.u32 %s118, %s119
    %p121 = scmp.eq.s32.totalorder %s120, 0
    %s123 = sadd.s32 %s122, 1
    %s124 = scalar_select %p121, %s122, %s123
    %p127 = pneg %p121
    %p128 = scmp.eq.s32.totalorder %s9, 2
    %p129 = por %p127, %p128
    %p130 = scmp.ne.s32.totalorder %s122, %s125
    %p131 = scmp.eq.s32.totalorder %s9, 0
    %p132 = por %p130, %p131
    %p133 = scmp.ne.s32.totalorder %s122, %s125
    %p134 = scmp.eq.s32.totalorder %s14, 2
    %p135 = por %p133, %p134
    %p136 = scmp.ne.s32.totalorder %s125, %s126
    %p137 = scmp.eq.s32.totalorder %s14, 0
    %p138 = por %p136, %p137
    %p139 = scmp.ne.s32.totalorder %s125, %s126
    %p140 = scmp.eq.s32.totalorder %s15, 2
    %p141 = por %p139, %p140
    %p143 = scmp.ne.s32.totalorder %s126, %s142
    %p144 = scmp.eq.s32.totalorder %s15, 0
    %p145 = por %p143, %p144
    %p146 = scmp.le.s32.totalorder 1, %s9
    %p147 = scmp.lt.s32.totalorder %s9, 4
    %p148 = pnand %p146, %p147
    %p149 = pneg %p148
    // Predicated region
    $region9: #{mgcl_forward_pallas.6} parent=5 // pred_check
      _
    $region10: #{mgcl_forward_pallas.6} parent=5 // pred_check_branch
      %151 = sbr.rel (%p148) target = $region12
    $region11: #{mgcl_forward_pallas.6} parent=5 // pred_region
      %s152 = ssub.s32 %s9, 1
      // Predicated region
      $region13: #{mgcl_forward_pallas.6} parent=11 // pred_check
        %p153 = pneg %p110
      $region14: #{mgcl_forward_pallas.6} parent=11 // pred_check_branch
        %155 = sbr.rel (%p153) target = $region16
      $region15: #{mgcl_forward_pallas.6} parent=11 // pred_region
        %p156 = scmp.lt.s32.totalorder %s20, 0
        %s157 = scalar_select %p156, %s20, 0
        %s158 = scalar_lea.vmem %s2, %s157
      $region16: #{mgcl_forward_pallas.6} parent=11 // pred_fallthru
        _
    $region12: #{mgcl_forward_pallas.6} parent=5 // pred_fallthru
      _
    %p159 = scmp.lt.s32.totalorder %s9, 3
    // Predicated region
    $region17: #{mgcl_forward_pallas.6} parent=5 // pred_check
      %p160 = pneg %p159
    $region18: #{mgcl_forward_pallas.6} parent=5 // pred_check_branch
      %162 = sbr.rel (%p160) target = $region20
    $region19: #{mgcl_forward_pallas.6} parent=5 // pred_region
      // Predicated region
      $region21: #{mgcl_forward_pallas.6} parent=19 // pred_check
        %p163 = pneg %p50
      $region22: #{mgcl_forward_pallas.6} parent=19 // pred_check_branch
        %165 = sbr.rel (%p163) target = $region24
      $region23: #{mgcl_forward_pallas.6} parent=19 // pred_region
        %p166 = scmp.lt.s32.totalorder %s16, 0
        %s167 = scalar_select %p166, %s16, 0
        %p168 = scmp.lt.s32.totalorder %s18, 2
        %s169 = scalar_select %p168, %s18, 2
        %s170 = smul.addr %s167, 3
        %s171 = sadd.s32 %s169, %s170
        %s172 = smul.addr %s171, 8
        %s173 = scalar_lea.vmem %s0, %s172
      $region24: #{mgcl_forward_pallas.6} parent=19 // pred_fallthru
        _
      // Predicated region
      $region25: #{mgcl_forward_pallas.6} parent=19 // pred_check
        %p174 = pneg %p78
      $region26: #{mgcl_forward_pallas.6} parent=19 // pred_check_branch
        %176 = sbr.rel (%p174) target = $region28
      $region27: #{mgcl_forward_pallas.6} parent=19 // pred_region
        %s177 = smul.u32 16, %s18
        %p178 = scmp.lt.s32.totalorder %s177, 47
        %s179 = scalar_select %p178, %s177, 47
        %p180 = scmp.lt.s32.totalorder %s17, 0
        %s181 = scalar_select %p180, %s17, 0
        %s182 = sadd.s32 %s181, %s179
        %s183 = smul.addr %s182, 8
        %s184 = scalar_lea.vmem %s1, %s183
        %s185 = smul.u32 16, %s18
      $region28: #{mgcl_forward_pallas.6} parent=19 // pred_fallthru
        _
    $region20: #{mgcl_forward_pallas.6} parent=5 // pred_fallthru
      _
    %p186 = scmp.le.s32.totalorder 1, %s9
    %p187 = scmp.lt.s32.totalorder %s9, 4
    %p188 = pnand %p186, %p187
    %p189 = pneg %p188
    // Predicated region
    $region29: #{mgcl_forward_pallas.6} parent=5 // pred_check
      _
    $region30: #{mgcl_forward_pallas.6} parent=5 // pred_check_branch
      %191 = sbr.rel (%p188) target = $region32
    $region31: #{mgcl_forward_pallas.6} parent=5 // pred_region
      %s192 = ssub.s32 %s9, 1
      %p193 = scmp.lt.s32.totalorder %s19, 0
      %s194 = scalar_select %p193, %s19, 0
      %p195 = scmp.lt.s32.totalorder %s21, 2
      %s196 = scalar_select %p195, %s21, 2
      %s197 = smul.addr %s194, 3
      %s198 = sadd.s32 %s196, %s197
      %s199 = smul.addr %s198, 8
      %s200 = scalar_lea.vmem %s0, %s199
      %p201 = pneg %p56
      %p202 = pneg %p53
      %s203 = smul.u32 16, %s21
      %p204 = scmp.lt.s32.totalorder %s203, 47
      %s205 = scalar_select %p204, %s203, 47
      %p206 = scmp.lt.s32.totalorder %s20, 0
      %s207 = scalar_select %p206, %s20, 0
      %s208 = sadd.s32 %s207, %s205
      %s209 = smul.addr %s208, 8
      %s210 = scalar_lea.vmem %s1, %s209
      %p211 = pneg %p84
      %p212 = pneg %p81
      %p213 = scmp.lt.s32.totalorder %s20, 0
      %s214 = scalar_select %p213, %s20, 0
      %s215 = scalar_lea.vmem %s2, %s214
      %p216 = pneg %p110
      %p217 = pneg %p107
      %p218 = pneg %p138
      %p219 = pneg %p135
      %p220 = scmp.lt.s32.totalorder %s19, 0
      %s221 = scalar_select %p220, %s19, 0
      %p222 = scmp.lt.s32.totalorder %s20, 0
      %s223 = scalar_select %p222, %s20, 0
      %s224 = sadd.s32 %s223, %s221
      %s225 = smul.addr %s224, 8
      %s226 = scalar_lea.vmem %s3, %s225
      %p227 = scmp.lt.s32.totalorder %s19, 0
      %s228 = scalar_select %p227, %s19, 0
      %p229 = scmp.lt.s32.totalorder %s21, 2
      %s230 = scalar_select %p229, %s21, 2
      %s231 = smul.addr %s228, 3
      %s232 = sadd.s32 %s230, %s231
      %s233 = smul.addr %s232, 8
      %s234 = scalar_lea.vmem %s0, %s233
      %s235 = smul.u32 16, %s21
      %p236 = scmp.lt.s32.totalorder %s235, 47
      %s237 = scalar_select %p236, %s235, 47
      %p238 = scmp.lt.s32.totalorder %s20, 0
      %s239 = scalar_select %p238, %s20, 0
      %s240 = sadd.s32 %s239, %s237
      %s241 = smul.addr %s240, 8
      %s242 = scalar_lea.vmem %s1, %s241
      %s243 = smul.u32 16, %s21
      %p244 = scmp.lt.s32.totalorder %s20, 0
      %s245 = scalar_select %p244, %s20, 0
      %s246 = scalar_lea.vmem %s2, %s245
      %p247 = scmp.lt.s32.totalorder %s19, 0
      %s248 = scalar_select %p247, %s19, 0
      %p249 = scmp.lt.s32.totalorder %s20, 0
      %s250 = scalar_select %p249, %s20, 0
      %s251 = sadd.s32 %s250, %s248
      %s252 = smul.addr %s251, 8
      %s253 = scalar_lea.vmem %s3, %s252
      %p254 = scmp.eq.s32.totalorder %s21, 0
      // Predicated region
      $region33: #{mgcl_forward_pallas.6} parent=31 // pred_check
        %p255 = pneg %p254
      $region34: #{mgcl_forward_pallas.6} parent=31 // pred_check_branch
        %257 = sbr.rel (%p255) target = $region36
      $region35: #{mgcl_forward_pallas.6} parent=31 // pred_region
        %258 = vst [vmem:[#allocation2] sm:$0xff] 0.0
      $region36: #{mgcl_forward_pallas.6} parent=31 // pred_fallthru
        _
      %v259 = vld [vmem:[#allocation2] sm:$0xff]
      %v260 = vld [vmem:[%s234] sm:$0xff]
      %v261 = vpack.c.bf16 %v260, %v260
      %v262 = vld [vmem:[%s242] sm:$0xff]
      %v263 = vld [vmem:[%s242 + $0x8] sm:$0xff]
      %v264 = vld [vmem:[%s242 + $0x10] sm:$0xff]
      %v265 = vld [vmem:[%s242 + $0x18] sm:$0xff]
      %v266 = vld [vmem:[%s242 + $0x20] sm:$0xff]
      %v267 = vld [vmem:[%s242 + $0x28] sm:$0xff]
      %v268 = vld [vmem:[%s242 + $0x30] sm:$0xff]
      %v269 = vld [vmem:[%s242 + $0x38] sm:$0xff]
      %v270 = vld [vmem:[%s242 + $0x40] sm:$0xff]
      %v271 = vld [vmem:[%s242 + $0x48] sm:$0xff]
      %v272 = vld [vmem:[%s242 + $0x50] sm:$0xff]
      %v273 = vld [vmem:[%s242 + $0x58] sm:$0xff]
      %v274 = vld [vmem:[%s242 + $0x60] sm:$0xff]
      %v275 = vld [vmem:[%s242 + $0x68] sm:$0xff]
      %v276 = vld [vmem:[%s242 + $0x70] sm:$0xff]
      %v277 = vld [vmem:[%s242 + $0x78] sm:$0xff]
      %v278 = vpack.c.bf16 %v263, %v262
      %v279 = vpack.c.bf16 %v265, %v264
      %v280 = vpack.c.bf16 %v267, %v266
      %v281 = vpack.c.bf16 %v269, %v268
      %v282 = vpack.c.bf16 %v271, %v270
      %v283 = vpack.c.bf16 %v273, %v272
      %v284 = vpack.c.bf16 %v275, %v274
      %v285 = vpack.c.bf16 %v277, %v276
      %286 = vmatpush.bf16.msra.mxu0 %v285
      %287 = vmatpush.bf16.msra.mxu0 %v284
      %288 = vmatpush.bf16.msra.mxu0 %v283
      %289 = vmatpush.bf16.msra.mxu0 %v282
      %290 = vmatpush.bf16.msra.mxu0 %v281
      %291 = vmatpush.bf16.msra.mxu0 %v280
      %292 = vmatpush.bf16.msra.mxu0 %v279
      %293 = vmatpush.bf16.msra.mxu0 %v278
      %294 = vmatmul.bf16.gmra.mxu0 %v261
      %v295 = vpop.f32.mrf.mxu0
      %v296 = vadd.f32 0.0, %v295
      %v297 = vpop.f32.mrf.mxu0
      %298 = vdwg.mxu0
      %v299 = vadd.f32 %v259, %v296
      %300 = vst [vmem:[#allocation2] sm:$0xff] %v299
      %p301 = scmp.eq.s32.totalorder %s21, 2
      // Predicated region
      $region37: #{mgcl_forward_pallas.6} parent=31 // pred_check
        %p302 = pneg %p301
      $region38: #{mgcl_forward_pallas.6} parent=31 // pred_check_branch
        %304 = sbr.rel (%p302) target = $region40
      $region39: #{mgcl_forward_pallas.6} parent=31 // pred_region
        %v305 = vld [vmem:[#allocation2] sm:$0xff]
        %v306 = vld [vmem:[%s246] sm:$0x1]
        %v308 = vperm.slane %v306, 0
        %v310 = vadd.f32 %v305, %v308
        %311 = vst [vmem:[%s253] sm:$0xff] %v310
      $region40: #{mgcl_forward_pallas.6} parent=31 // pred_fallthru
        _
      %p312 = scmp.lt.s32.totalorder %s19, 0
      %s313 = scalar_select %p312, %s19, 0
      %p314 = scmp.lt.s32.totalorder %s20, 0
      %s315 = scalar_select %p314, %s20, 0
      %s316 = sadd.s32 %s315, %s313
      %s317 = smul.addr %s316, 8
      %s318 = scalar_lea.vmem %s3, %s317
      // Predicated region
      $region41: #{mgcl_forward_pallas.6} parent=31 // pred_check
        %p319 = pneg %p135
      $region42: #{mgcl_forward_pallas.6} parent=31 // pred_check_branch
        %321 = sbr.rel (%p319) target = $region44
      $region43: #{mgcl_forward_pallas.6} parent=31 // pred_region
        _
      $region44: #{mgcl_forward_pallas.6} parent=31 // pred_fallthru
        _
      // Predicated region
      $region45: #{mgcl_forward_pallas.6} parent=31 // pred_check
        %p322 = pneg %p135
      $region46: #{mgcl_forward_pallas.6} parent=31 // pred_check_branch
        %324 = sbr.rel (%p322) target = $region48
      $region47: #{mgcl_forward_pallas.6} parent=31 // pred_region
        %p325 = scmp.lt.s32.totalorder %s19, 0
        %s326 = scalar_select %p325, %s19, 0
        %p327 = scmp.lt.s32.totalorder %s20, 0
        %s328 = scalar_select %p327, %s20, 0
        %s329 = sadd.s32 %s328, %s326
        %s330 = smul.addr %s329, 8
        %s331 = scalar_lea.vmem %s3, %s330
      $region48: #{mgcl_forward_pallas.6} parent=31 // pred_fallthru
        _
    $region32: #{mgcl_forward_pallas.6} parent=5 // pred_fallthru
      _
    %p332 = scmp.le.s32.totalorder 2, %s9
    // Predicated region
    $region49: #{mgcl_forward_pallas.6} parent=5 // pred_check
      %p333 = pneg %p332
    $region50: #{mgcl_forward_pallas.6} parent=5 // pred_check_branch
      %335 = sbr.rel (%p333) target = $region52
    $region51: #{mgcl_forward_pallas.6} parent=5 // pred_region
      %s336 = ssub.s32 %s9, 2
    $region52: #{mgcl_forward_pallas.6} parent=5 // pred_fallthru
      _
  $region6: #{mgcl_forward_pallas.6} parent=0 // loop_footer
    %s13 = sadd.s32 1, %s9
  $region7: #{mgcl_forward_pallas.6} parent=0 // loop_footer_branch
    %8 = sbr.rel target = $region3
  $region8: #{mgcl_forward_pallas.6} parent=0 // loop_exit
    _

// kernel: mgcl_forward_pallas.8
$region0: #{mgcl_forward_pallas.8}
  #allocation0 [shape = 'u32[]', space=smem, size = 0x4, offset = 0x4, fixed_abs, tag = 'smem constant byte address 0x4 - core index']
  #allocation1 [shape = 'u32[72,128]{1,0:T(1,128)}', space=vmem, size = 0x9000, scoped, tag = 'internal scratch']
  %s0 = inlined_call_operand.vmem [shape: f32[128,128], index: 0, kind: input, shape index: {}]
  %s1 = inlined_call_operand.vmem [shape: bf16[128,128], index: 1, kind: input, shape index: {}]
  %s2 = inlined_call_operand.vmem [shape: f32[128,128], index: 2, kind: output, shape index: {}]
  %s3 = sld [smem:[#allocation0]]
  $region18: #{mgcl_forward_pallas.8} parent=0
    _
  %s5 = ssub.s32 1, %s3
  %s6 = scalar_select 0, %s5, %s3
  // Predicated region
  $region2: #{mgcl_forward_pallas.8} parent=0 // pred_check
    _
  $region3: #{mgcl_forward_pallas.8} parent=0 // pred_check_branch
    %8 = sbr.rel (0) target = $region5
  $region4: #{mgcl_forward_pallas.8} parent=0 // pred_region
    _
  $region5: #{mgcl_forward_pallas.8} parent=0 // pred_fallthru
    _
  // Predicated region
  $region6: #{mgcl_forward_pallas.8} parent=0 // pred_check
    _
  $region7: #{mgcl_forward_pallas.8} parent=0 // pred_check_branch
    %10 = sbr.rel (0) target = $region9
  $region8: #{mgcl_forward_pallas.8} parent=0 // pred_region
    _
  $region9: #{mgcl_forward_pallas.8} parent=0 // pred_fallthru
    _
  %v11 = vld [vmem:[%s0] sm:$0xff]
  %v12 = vld [vmem:[%s0 + $0x8] sm:$0xff]
  %v13 = vld [vmem:[%s0 + $0x10] sm:$0xff]
  %v14 = vld [vmem:[%s0 + $0x18] sm:$0xff]
  %v15 = vld [vmem:[%s0 + $0x20] sm:$0xff]
  %v16 = vld [vmem:[%s0 + $0x28] sm:$0xff]
  %v17 = vld [vmem:[%s0 + $0x30] sm:$0xff]
  %v18 = vld [vmem:[%s0 + $0x38] sm:$0xff]
  %v19 = vld [vmem:[%s0 + $0x40] sm:$0xff]
  %v20 = vld [vmem:[%s0 + $0x48] sm:$0xff]
  %v21 = vld [vmem:[%s0 + $0x50] sm:$0xff]
  %v22 = vld [vmem:[%s0 + $0x58] sm:$0xff]
  %v23 = vld [vmem:[%s0 + $0x60] sm:$0xff]
  %v24 = vld [vmem:[%s0 + $0x68] sm:$0xff]
  %v25 = vld [vmem:[%s0 + $0x70] sm:$0xff]
  %v26 = vld [vmem:[%s0 + $0x78] sm:$0xff]
  %v27 = vpack.c.bf16 %v12, %v11
  %v28 = vpack.c.bf16 %v14, %v13
  %v29 = vpack.c.bf16 %v16, %v15
  %v30 = vpack.c.bf16 %v18, %v17
  %v31 = vpack.c.bf16 %v20, %v19
  %v32 = vpack.c.bf16 %v22, %v21
  %v33 = vpack.c.bf16 %v24, %v23
  %v34 = vpack.c.bf16 %v26, %v25
  %v35 = vld [vmem:[%s1] sm:$0xf]
  %v36 = vld [vmem:[%s1 + $0x4] sm:$0xf]
  %v37 = vld [vmem:[%s1 + $0x8] sm:$0xf]
  %v38 = vld [vmem:[%s1 + $0xc] sm:$0xf]
  %v39 = vld [vmem:[%s1 + $0x10] sm:$0xf]
  %v40 = vld [vmem:[%s1 + $0x14] sm:$0xf]
  %v41 = vld [vmem:[%s1 + $0x18] sm:$0xf]
  %v42 = vld [vmem:[%s1 + $0x1c] sm:$0xf]
  %v43 = vld [vmem:[%s1 + $0x20] sm:$0xf]
  %v44 = vld [vmem:[%s1 + $0x24] sm:$0xf]
  %v45 = vld [vmem:[%s1 + $0x28] sm:$0xf]
  %v46 = vld [vmem:[%s1 + $0x2c] sm:$0xf]
  %v47 = vld [vmem:[%s1 + $0x30] sm:$0xf]
  %v48 = vld [vmem:[%s1 + $0x34] sm:$0xf]
  %v49 = vld [vmem:[%s1 + $0x38] sm:$0xf]
  %v50 = vld [vmem:[%s1 + $0x3c] sm:$0xf]
  %v67 = vunpack.c.l.b16 %v35
  %v68 = vunpack.c.l.b16 %v36
  %v69 = vunpack.c.l.b16 %v37
  %v70 = vunpack.c.l.b16 %v38
  %v71 = vunpack.c.l.b16 %v39
  %v72 = vunpack.c.l.b16 %v40
  %v73 = vunpack.c.l.b16 %v41
  %v74 = vunpack.c.l.b16 %v42
  %v75 = vunpack.c.l.b16 %v43
  %v76 = vunpack.c.l.b16 %v44
  %v77 = vunpack.c.l.b16 %v45
  %v78 = vunpack.c.l.b16 %v46
  %v79 = vunpack.c.l.b16 %v47
  %v80 = vunpack.c.l.b16 %v48
  %v81 = vunpack.c.l.b16 %v49
  %v82 = vunpack.c.l.b16 %v50
  %v83 = vpack.c.b16 %v68, %v67
  %v84 = vpack.c.b16 %v70, %v69
  %v85 = vpack.c.b16 %v72, %v71
  %v86 = vpack.c.b16 %v74, %v73
  %v87 = vpack.c.b16 %v76, %v75
  %v88 = vpack.c.b16 %v78, %v77
  %v89 = vpack.c.b16 %v80, %v79
  %v90 = vpack.c.b16 %v82, %v81
  %99 = vmatpush.bf16.msra.mxu0 %v90
  %100 = vmatpush.bf16.msra.mxu0 %v89
  %101 = vmatpush.bf16.msra.mxu0 %v88
  %102 = vmatpush.bf16.msra.mxu0 %v87
  %103 = vmatpush.bf16.msra.mxu0 %v86
  %104 = vmatpush.bf16.msra.mxu0 %v85
  %105 = vmatpush.bf16.msra.mxu0 %v84
  %106 = vmatpush.bf16.msra.mxu0 %v83
  %107 = vmatmul.bf16.gmra.mxu0 %v27
  %v108 = vpop.f32.mrf.mxu0
  %v109 = vadd.f32 0.0, %v108
  %v110 = vpop.f32.mrf.mxu0
  %v111 = vadd.f32 0.0, %v110
  %112 = vmatmul.bf16.gmra.mxu0 %v28
  %v113 = vpop.f32.mrf.mxu0
  %v114 = vadd.f32 0.0, %v113
  %v115 = vpop.f32.mrf.mxu0
  %v116 = vadd.f32 0.0, %v115
  %117 = vmatmul.bf16.gmra.mxu0 %v29
  %v118 = vpop.f32.mrf.mxu0
  %v119 = vadd.f32 0.0, %v118
  %v120 = vpop.f32.mrf.mxu0
  %v121 = vadd.f32 0.0, %v120
  %122 = vmatmul.bf16.gmra.mxu0 %v30
  %v123 = vpop.f32.mrf.mxu0
  %v124 = vadd.f32 0.0, %v123
  %v125 = vpop.f32.mrf.mxu0
  %v126 = vadd.f32 0.0, %v125
  %127 = vmatmul.bf16.gmra.mxu0 %v31
  %v128 = vpop.f32.mrf.mxu0
  %v129 = vadd.f32 0.0, %v128
  %v130 = vpop.f32.mrf.mxu0
  %v131 = vadd.f32 0.0, %v130
  %132 = vmatmul.bf16.gmra.mxu0 %v32
  %v133 = vpop.f32.mrf.mxu0
  %v134 = vadd.f32 0.0, %v133
  %v135 = vpop.f32.mrf.mxu0
  %v136 = vadd.f32 0.0, %v135
  %137 = vmatmul.bf16.gmra.mxu0 %v33
  %v138 = vpop.f32.mrf.mxu0
  %v139 = vadd.f32 0.0, %v138
  %v140 = vpop.f32.mrf.mxu0
  %v141 = vadd.f32 0.0, %v140
  %142 = vmatmul.bf16.gmra.mxu0 %v34
  %v143 = vpop.f32.mrf.mxu0
  %v144 = vadd.f32 0.0, %v143
  %v145 = vpop.f32.mrf.mxu0
  %v146 = vadd.f32 0.0, %v145
  %147 = vdwg.mxu0
  %148 = vst [vmem:[%s2] sm:$0xff] %v109
  %149 = vst [vmem:[%s2 + $0x8] sm:$0xff] %v111
  %150 = vst [vmem:[%s2 + $0x10] sm:$0xff] %v114
  %151 = vst [vmem:[%s2 + $0x18] sm:$0xff] %v116
  %152 = vst [vmem:[%s2 + $0x20] sm:$0xff] %v119
  %153 = vst [vmem:[%s2 + $0x28] sm:$0xff] %v121
  %154 = vst [vmem:[%s2 + $0x30] sm:$0xff] %v124
  %155 = vst [vmem:[%s2 + $0x38] sm:$0xff] %v126
  %156 = vst [vmem:[%s2 + $0x40] sm:$0xff] %v129
  %157 = vst [vmem:[%s2 + $0x48] sm:$0xff] %v131
  %158 = vst [vmem:[%s2 + $0x50] sm:$0xff] %v134
  %159 = vst [vmem:[%s2 + $0x58] sm:$0xff] %v136
  %160 = vst [vmem:[%s2 + $0x60] sm:$0xff] %v139
  %161 = vst [vmem:[%s2 + $0x68] sm:$0xff] %v141
  %162 = vst [vmem:[%s2 + $0x70] sm:$0xff] %v144
  %163 = vst [vmem:[%s2 + $0x78] sm:$0xff] %v146
  // Predicated region
  $region10: #{mgcl_forward_pallas.8} parent=0 // pred_check
    _
  $region11: #{mgcl_forward_pallas.8} parent=0 // pred_check_branch
    %165 = sbr.rel (0) target = $region13
  $region12: #{mgcl_forward_pallas.8} parent=0 // pred_region
    _
  $region13: #{mgcl_forward_pallas.8} parent=0 // pred_fallthru
    _
  // Predicated region
  $region14: #{mgcl_forward_pallas.8} parent=0 // pred_check
    _
  $region15: #{mgcl_forward_pallas.8} parent=0 // pred_check_branch
    %167 = sbr.rel (0) target = $region17
  $region16: #{mgcl_forward_pallas.8} parent=0 // pred_region
    _
  $region17: #{mgcl_forward_pallas.8} parent=0 // pred_fallthru
    _

// kernel: mgcl_forward_pallas.9
$region0: #{mgcl_forward_pallas.9}
  #allocation0 [shape = 'u32[]', space=smem, size = 0x4, offset = 0x4, fixed_abs, tag = 'smem constant byte address 0x4 - core index']
  #allocation1 [shape = 'u32[72,128]{1,0:T(1,128)}', space=vmem, size = 0x9000, scoped, tag = 'internal scratch']
  %s0 = inlined_call_operand.vmem [shape: bf16[128,128], index: 0, kind: input, shape index: {}]
  %s1 = inlined_call_operand.vmem [shape: f32[128,128], index: 1, kind: input, shape index: {}]
  %s2 = inlined_call_operand.vmem [shape: f32[1,128], index: 2, kind: input, shape index: {}]
  %s3 = inlined_call_operand.vmem [shape: f32[128,128], index: 3, kind: output, shape index: {}]
  %s4 = sld [smem:[#allocation0]]
  $region22: #{mgcl_forward_pallas.9} parent=0
    _
  %s6 = ssub.s32 1, %s4
  %s7 = scalar_select 0, %s6, %s4
  // Predicated region
  $region2: #{mgcl_forward_pallas.9} parent=0 // pred_check
    _
  $region3: #{mgcl_forward_pallas.9} parent=0 // pred_check_branch
    %9 = sbr.rel (0) target = $region5
  $region4: #{mgcl_forward_pallas.9} parent=0 // pred_region
    _
  $region5: #{mgcl_forward_pallas.9} parent=0 // pred_fallthru
    _
  // Predicated region
  $region6: #{mgcl_forward_pallas.9} parent=0 // pred_check
    _
  $region7: #{mgcl_forward_pallas.9} parent=0 // pred_check_branch
    %11 = sbr.rel (0) target = $region9
  $region8: #{mgcl_forward_pallas.9} parent=0 // pred_region
    _
  $region9: #{mgcl_forward_pallas.9} parent=0 // pred_fallthru
    _
  // Predicated region
  $region10: #{mgcl_forward_pallas.9} parent=0 // pred_check
    _
  $region11: #{mgcl_forward_pallas.9} parent=0 // pred_check_branch
    %13 = sbr.rel (0) target = $region13
  $region12: #{mgcl_forward_pallas.9} parent=0 // pred_region
    _
  $region13: #{mgcl_forward_pallas.9} parent=0 // pred_fallthru
    _
  %v14 = vld [vmem:[%s0] sm:$0xf]
  %v15 = vld [vmem:[%s0 + $0x4] sm:$0xf]
  %v16 = vld [vmem:[%s0 + $0x8] sm:$0xf]
  %v17 = vld [vmem:[%s0 + $0xc] sm:$0xf]
  %v18 = vld [vmem:[%s0 + $0x10] sm:$0xf]
  %v19 = vld [vmem:[%s0 + $0x14] sm:$0xf]
  %v20 = vld [vmem:[%s0 + $0x18] sm:$0xf]
  %v21 = vld [vmem:[%s0 + $0x1c] sm:$0xf]
  %v22 = vld [vmem:[%s0 + $0x20] sm:$0xf]
  %v23 = vld [vmem:[%s0 + $0x24] sm:$0xf]
  %v24 = vld [vmem:[%s0 + $0x28] sm:$0xf]
  %v25 = vld [vmem:[%s0 + $0x2c] sm:$0xf]
  %v26 = vld [vmem:[%s0 + $0x30] sm:$0xf]
  %v27 = vld [vmem:[%s0 + $0x34] sm:$0xf]
  %v28 = vld [vmem:[%s0 + $0x38] sm:$0xf]
  %v29 = vld [vmem:[%s0 + $0x3c] sm:$0xf]
  %v30 = vld [vmem:[%s1] sm:$0xff]
  %v31 = vld [vmem:[%s1 + $0x8] sm:$0xff]
  %v32 = vld [vmem:[%s1 + $0x10] sm:$0xff]
  %v33 = vld [vmem:[%s1 + $0x18] sm:$0xff]
  %v34 = vld [vmem:[%s1 + $0x20] sm:$0xff]
  %v35 = vld [vmem:[%s1 + $0x28] sm:$0xff]
  %v36 = vld [vmem:[%s1 + $0x30] sm:$0xff]
  %v37 = vld [vmem:[%s1 + $0x38] sm:$0xff]
  %v38 = vld [vmem:[%s1 + $0x40] sm:$0xff]
  %v39 = vld [vmem:[%s1 + $0x48] sm:$0xff]
  %v40 = vld [vmem:[%s1 + $0x50] sm:$0xff]
  %v41 = vld [vmem:[%s1 + $0x58] sm:$0xff]
  %v42 = vld [vmem:[%s1 + $0x60] sm:$0xff]
  %v43 = vld [vmem:[%s1 + $0x68] sm:$0xff]
  %v44 = vld [vmem:[%s1 + $0x70] sm:$0xff]
  %v45 = vld [vmem:[%s1 + $0x78] sm:$0xff]
  %v46 = vpack.c.bf16 %v31, %v30
  %v47 = vpack.c.bf16 %v33, %v32
  %v48 = vpack.c.bf16 %v35, %v34
  %v49 = vpack.c.bf16 %v37, %v36
  %v50 = vpack.c.bf16 %v39, %v38
  %v51 = vpack.c.bf16 %v41, %v40
  %v52 = vpack.c.bf16 %v43, %v42
  %v53 = vpack.c.bf16 %v45, %v44
  %v54 = vld [vmem:[%s2] sm:$0x1]
  %v56 = vperm.slane %v54, 0
  %v74 = vunpack.c.l.b16 %v14
  %v75 = vunpack.c.l.b16 %v15
  %v76 = vunpack.c.l.b16 %v16
  %v77 = vunpack.c.l.b16 %v17
  %v78 = vunpack.c.l.b16 %v18
  %v79 = vunpack.c.l.b16 %v19
  %v80 = vunpack.c.l.b16 %v20
  %v81 = vunpack.c.l.b16 %v21
  %v82 = vunpack.c.l.b16 %v22
  %v83 = vunpack.c.l.b16 %v23
  %v84 = vunpack.c.l.b16 %v24
  %v85 = vunpack.c.l.b16 %v25
  %v86 = vunpack.c.l.b16 %v26
  %v87 = vunpack.c.l.b16 %v27
  %v88 = vunpack.c.l.b16 %v28
  %v89 = vunpack.c.l.b16 %v29
  %v90 = vpack.c.b16 %v75, %v74
  %v91 = vpack.c.b16 %v77, %v76
  %v92 = vpack.c.b16 %v79, %v78
  %v93 = vpack.c.b16 %v81, %v80
  %v94 = vpack.c.b16 %v83, %v82
  %v95 = vpack.c.b16 %v85, %v84
  %v96 = vpack.c.b16 %v87, %v86
  %v97 = vpack.c.b16 %v89, %v88
  %106 = vmatpush.bf16.msra.mxu0 %v53
  %107 = vmatpush.bf16.msra.mxu0 %v52
  %108 = vmatpush.bf16.msra.mxu0 %v51
  %109 = vmatpush.bf16.msra.mxu0 %v50
  %110 = vmatpush.bf16.msra.mxu0 %v49
  %111 = vmatpush.bf16.msra.mxu0 %v48
  %112 = vmatpush.bf16.msra.mxu0 %v47
  %113 = vmatpush.bf16.msra.mxu0 %v46
  %114 = vmatmul.bf16.gmra.mxu0 %v90
  %v115 = vpop.f32.mrf.mxu0
  %v116 = vadd.f32 %v56, %v115
  %v117 = vpop.f32.mrf.mxu0
  %v118 = vadd.f32 %v56, %v117
  %119 = vmatmul.bf16.gmra.mxu0 %v91
  %v120 = vpop.f32.mrf.mxu0
  %v121 = vadd.f32 %v56, %v120
  %v122 = vpop.f32.mrf.mxu0
  %v123 = vadd.f32 %v56, %v122
  %124 = vmatmul.bf16.gmra.mxu0 %v92
  %v125 = vpop.f32.mrf.mxu0
  %v126 = vadd.f32 %v56, %v125
  %v127 = vpop.f32.mrf.mxu0
  %v128 = vadd.f32 %v56, %v127
  %129 = vmatmul.bf16.gmra.mxu0 %v93
  %v130 = vpop.f32.mrf.mxu0
  %v131 = vadd.f32 %v56, %v130
  %v132 = vpop.f32.mrf.mxu0
  %v133 = vadd.f32 %v56, %v132
  %134 = vmatmul.bf16.gmra.mxu0 %v94
  %v135 = vpop.f32.mrf.mxu0
  %v136 = vadd.f32 %v56, %v135
  %v137 = vpop.f32.mrf.mxu0
  %v138 = vadd.f32 %v56, %v137
  %139 = vmatmul.bf16.gmra.mxu0 %v95
  %v140 = vpop.f32.mrf.mxu0
  %v141 = vadd.f32 %v56, %v140
  %v142 = vpop.f32.mrf.mxu0
  %v143 = vadd.f32 %v56, %v142
  %144 = vmatmul.bf16.gmra.mxu0 %v96
  %v145 = vpop.f32.mrf.mxu0
  %v146 = vadd.f32 %v56, %v145
  %v147 = vpop.f32.mrf.mxu0
  %v148 = vadd.f32 %v56, %v147
  %149 = vmatmul.bf16.gmra.mxu0 %v97
  %v150 = vpop.f32.mrf.mxu0
  %v151 = vadd.f32 %v56, %v150
  %v152 = vpop.f32.mrf.mxu0
  %v153 = vadd.f32 %v56, %v152
  %154 = vdwg.mxu0
  %155 = vst [vmem:[%s3] sm:$0xff] %v116
  %156 = vst [vmem:[%s3 + $0x8] sm:$0xff] %v118
  %157 = vst [vmem:[%s3 + $0x10] sm:$0xff] %v121
  %158 = vst [vmem:[%s3 + $0x18] sm:$0xff] %v123
  %159 = vst [vmem:[%s3 + $0x20] sm:$0xff] %v126
  %160 = vst [vmem:[%s3 + $0x28] sm:$0xff] %v128
  %161 = vst [vmem:[%s3 + $0x30] sm:$0xff] %v131
  %162 = vst [vmem:[%s3 + $0x38] sm:$0xff] %v133
  %163 = vst [vmem:[%s3 + $0x40] sm:$0xff] %v136
  %164 = vst [vmem:[%s3 + $0x48] sm:$0xff] %v138
  %165 = vst [vmem:[%s3 + $0x50] sm:$0xff] %v141
  %166 = vst [vmem:[%s3 + $0x58] sm:$0xff] %v143
  %167 = vst [vmem:[%s3 + $0x60] sm:$0xff] %v146
  %168 = vst [vmem:[%s3 + $0x68] sm:$0xff] %v148
  %169 = vst [vmem:[%s3 + $0x70] sm:$0xff] %v151
  %170 = vst [vmem:[%s3 + $0x78] sm:$0xff] %v153
  // Predicated region
  $region14: #{mgcl_forward_pallas.9} parent=0 // pred_check
    _
  $region15: #{mgcl_forward_pallas.9} parent=0 // pred_check_branch
    %172 = sbr.rel (0) target = $region17
  $region16: #{mgcl_forward_pallas.9} parent=0 // pred_region
    _
  $region17: #{mgcl_forward_pallas.9} parent=0 // pred_fallthru
    _
  // Predicated region
  $region18: #{mgcl_forward_pallas.9} parent=0 // pred_check
    _
  $region19: #{mgcl_forward_pallas.9} parent=0 // pred_check_branch
    %174 = sbr.rel (0) target = $region21
  $region20: #{mgcl_forward_pallas.9} parent=0 // pred_region
    _
  $region21: #{mgcl_forward_pallas.9} parent=0 // pred_fallthru
    _

</llo_original>
